<compile_context>
chip_gen: v7x
topology: tpu7x:2x2x1
jax: 0.10.0
libtpu: 0.0.40
codegen_flags: <defaults>
</compile_context>

<pallas_src>
import functools

import jax
import jax.numpy as jnp
from jax.experimental import pallas as pl
from jax.experimental.pallas import tpu as pltpu


def _round_up(n: int, m: int) -> int:
    return ((n + m - 1) // m) * m


def _lora_proj_kernel(x_ref, w_ref, bias_ref, a_ref, b_ref, out_ref, *, lora_start):
    """One (tile_m, C) token tile -> (tile_m, N) projection with LoRA on cols [lora_start:]."""
    x = x_ref[...]                                                   # (tm, C) bf16

    # Base projection: (tm, C) @ (C, N) on the MXU, f32 accumulation, f32 bias add.
    base = jnp.dot(x, w_ref[...], preferred_element_type=jnp.float32) + bias_ref[...]

    # LoRA path: (tm, C) @ (C, r) -> cast to bf16 -> @ (r, C), f32 accumulation.
    xa = jnp.dot(x, a_ref[...], preferred_element_type=jnp.float32)
    lora = jnp.dot(xa.astype(b_ref.dtype), b_ref[...],
                   preferred_element_type=jnp.float32)

    if lora_start == 0:
        # LoRA covers the whole output (q projection).
        out_ref[...] = (base + lora).astype(out_ref.dtype)
    else:
        # kv projection: k columns stored untouched, v columns get the LoRA add.
        out_ref[:, :lora_start] = base[:, :lora_start].astype(out_ref.dtype)
        out_ref[:, lora_start:] = (base[:, lora_start:] + lora).astype(out_ref.dtype)


def _lora_proj(x, w_t, bias, a_t, b_t, *, tile_m=256,
               compute_dtype=jnp.bfloat16, vmem_limit_bytes=48 * 1024 * 1024):
    """x: (..., C) -> (..., N) where N = w_t.shape[1]; LoRA added to last C columns."""
    *lead, C = x.shape
    N = w_t.shape[1]
    r = a_t.shape[1]
    M = 1
    for d in lead:
        M *= d

    x2 = x.reshape(M, C)

    # Clamp the tile and pad M so arbitrary token counts work without shrinking tiles.
    tile_m = min(tile_m, _round_up(M, 8))
    M_pad = _round_up(M, tile_m)
    if M_pad != M:
        x2 = jnp.pad(x2, ((0, M_pad - M), (0, 0)))

    # bf16 matmul operands (MXU full-rate, halved HBM/VMEM bytes); f32 bias.
    xc = x2.astype(compute_dtype)
    wc = w_t.astype(compute_dtype)
    ac = a_t.astype(compute_dtype)
    bc = b_t.astype(compute_dtype)
    bias2 = bias.reshape(1, N).astype(jnp.float32)

    lora_start = N - C                       # q: 0  | kv: C
    kernel = functools.partial(_lora_proj_kernel, lora_start=lora_start)

    out2 = pl.pallas_call(
        kernel,
        out_shape=jax.ShapeDtypeStruct((M_pad, N), x.dtype),
        grid_spec=pltpu.PrefetchScalarGridSpec(
            num_scalar_prefetch=0,
            grid=(M_pad // tile_m,),
            in_specs=[
                pl.BlockSpec((tile_m, C), lambda i: (i, 0)),   # x tile (streamed)
                pl.BlockSpec((C, N), lambda i: (0, 0)),        # W^T   (resident)
                pl.BlockSpec((1, N), lambda i: (0, 0)),        # bias  (resident)
                pl.BlockSpec((C, r), lambda i: (0, 0)),        # A^T   (resident)
                pl.BlockSpec((r, C), lambda i: (0, 0)),        # B^T   (resident)
            ],
            out_specs=pl.BlockSpec((tile_m, N), lambda i: (i, 0)),
        ),
        compiler_params=pltpu.CompilerParams(
            dimension_semantics=("parallel",),
            vmem_limit_bytes=vmem_limit_bytes,
        ),
    )(xc, wc, bias2, ac, bc)

    if M_pad != M:
        out2 = out2[:M]
    return out2.reshape(*lead, N)


def lora_cross_q(x, wq_t, bq, aq_t, bq_lora_t, **kw):
    """_LoRA_cross_q.forward: q_lin(x) + B_q(A_q(x))."""
    return _lora_proj(x, wq_t, bq, aq_t, bq_lora_t, **kw)


def lora_cross_kv(x, wkv_t, bkv, av_t, bv_lora_t, **kw):
    """_LoRA_cross_kv.forward: kv = kv_lin(x); kv[..., -C:] += B_v(A_v(x))."""
    return _lora_proj(x, wkv_t, bkv, av_t, bv_lora_t, **kw)


# ---------------- pure-JAX references (same bf16-matmul recipe) ----------------

def _lora_proj_ref(x, w_t, bias, a_t, b_t, compute_dtype=jnp.bfloat16):
    C = x.shape[-1]
    N = w_t.shape[1]
    xc = x.astype(compute_dtype)
    base = jnp.dot(xc, w_t.astype(compute_dtype),
                   preferred_element_type=jnp.float32) + bias.astype(jnp.float32)
    xa = jnp.dot(xc, a_t.astype(compute_dtype), preferred_element_type=jnp.float32)
    lora = jnp.dot(xa.astype(compute_dtype), b_t.astype(compute_dtype),
                   preferred_element_type=jnp.float32)
    out = base.at[..., N - C:].add(lora)
    return out.astype(x.dtype)


if __name__ == "__main__":
    B, Ntok, C, r = 2, 8, 128, 4          # x: (B, N, N, C); C multiple of 128 (lane-dense)

    key = jax.random.PRNGKey(0)
    keys = jax.random.split(key, 9)

    x = jax.random.normal(keys[0], (B, Ntok, Ntok, C), dtype=jnp.float32)

    # PyTorch Linear stores (out, in); pre-transposed (in, out) copies for the kernel.
    wq_t = jax.random.normal(keys[1], (C, C), dtype=jnp.float32) * 0.05       # q_lin
    bq = jax.random.normal(keys[2], (C,), dtype=jnp.float32) * 0.05
    wkv_t = jax.random.normal(keys[3], (C, 2 * C), dtype=jnp.float32) * 0.05  # kv_lin
    bkv = jax.random.normal(keys[4], (2 * C,), dtype=jnp.float32) * 0.05
    aq_t = jax.random.normal(keys[5], (C, r), dtype=jnp.float32) * 0.05       # LoRA q
    bq_lora_t = jax.random.normal(keys[6], (r, C), dtype=jnp.float32) * 0.05
    av_t = jax.random.normal(keys[7], (C, r), dtype=jnp.float32) * 0.05       # LoRA v
    bv_lora_t = jax.random.normal(keys[8], (r, C), dtype=jnp.float32) * 0.05

    q_out = lora_cross_q(x, wq_t, bq, aq_t, bq_lora_t)
    kv_out = lora_cross_kv(x, wkv_t, bkv, av_t, bv_lora_t)
    q_out, kv_out = jax.block_until_ready((q_out, kv_out))

    q_ref = _lora_proj_ref(x, wq_t, bq, aq_t, bq_lora_t)
    kv_ref = _lora_proj_ref(x, wkv_t, bkv, av_t, bv_lora_t)

    assert q_out.shape == (B, Ntok, Ntok, C)
    assert kv_out.shape == (B, Ntok, Ntok, 2 * C)
    assert jnp.allclose(q_out, q_ref, atol=1e-2, rtol=1e-2), "q projection mismatch"
    assert jnp.allclose(kv_out, kv_ref, atol=1e-2, rtol=1e-2), "kv projection mismatch"

    print("KERNEL_OK")
</pallas_src>

<mosaic_0001>
module attributes {stable_mosaic.version = 11 : i64} {
  func.func @_lora_proj_kernel(%arg0: i32, %arg1: memref<128x128xbf16, #tpu.memory_space<vmem>>, %arg2: memref<128x128xbf16, #tpu.memory_space<vmem>>, %arg3: memref<1x128xf32, #tpu.memory_space<vmem>>, %arg4: memref<128x4xbf16, #tpu.memory_space<vmem>>, %arg5: memref<4x128xbf16, #tpu.memory_space<vmem>>, %arg6: memref<128x128xf32, #tpu.memory_space<vmem>>) attributes {dimension_semantics = [#tpu.dimension_semantics<parallel>], iteration_bounds = array<i64: 1>, scalar_prefetch = 0 : i64, scratch_operands = 0 : i64, tpu.core_type = #tpu.core_type<tc>, window_params = [{transform_indices = @transform_0, window_bounds = array<i64: 128, 128>}, {pipeline_mode = #tpu.pipeline_mode<synchronous>, transform_indices = @transform_1, window_bounds = array<i64: 128, 128>}, {pipeline_mode = #tpu.pipeline_mode<synchronous>, transform_indices = @transform_2, window_bounds = array<i64: 1, 128>}, {pipeline_mode = #tpu.pipeline_mode<synchronous>, transform_indices = @transform_3, window_bounds = array<i64: 128, 4>}, {pipeline_mode = #tpu.pipeline_mode<synchronous>, transform_indices = @transform_4, window_bounds = array<i64: 4, 128>}, {transform_indices = @transform_5, window_bounds = array<i64: 128, 128>}]} {
    %c0 = arith.constant 0 : index
    %c0_0 = arith.constant 0 : index
    %0 = vector.load %arg1[%c0, %c0_0] : memref<128x128xbf16, #tpu.memory_space<vmem>>, vector<128x128xbf16>
    %c0_1 = arith.constant 0 : index
    %c0_2 = arith.constant 0 : index
    %1 = vector.load %arg2[%c0_1, %c0_2] : memref<128x128xbf16, #tpu.memory_space<vmem>>, vector<128x128xbf16>
    %cst = arith.constant dense<0.000000e+00> : vector<128x128xf32>
    %2 = tpu.matmul %0, %1, %cst {dimension_numbers = #tpu.dot_dimension_numbers<[1], [0], [0], [1], [0, 0, 1, 1], [], []>} : vector<128x128xbf16>, vector<128x128xbf16>, vector<128x128xf32> -> vector<128x128xf32>
    %c0_3 = arith.constant 0 : index
    %c0_4 = arith.constant 0 : index
    %3 = vector.load %arg3[%c0_3, %c0_4] : memref<1x128xf32, #tpu.memory_space<vmem>>, vector<1x128xf32>
    %4 = vector.broadcast %3 : vector<1x128xf32> to vector<128x128xf32>
    %5 = arith.addf %2, %4 : vector<128x128xf32>
    %c0_5 = arith.constant 0 : index
    %c0_6 = arith.constant 0 : index
    %6 = vector.load %arg4[%c0_5, %c0_6] : memref<128x4xbf16, #tpu.memory_space<vmem>>, vector<128x4xbf16>
    %cst_7 = arith.constant dense<0.000000e+00> : vector<128x4xf32>
    %7 = tpu.matmul %0, %6, %cst_7 {dimension_numbers = #tpu.dot_dimension_numbers<[1], [0], [0], [1], [0, 0, 1, 1], [], []>} : vector<128x128xbf16>, vector<128x4xbf16>, vector<128x4xf32> -> vector<128x4xf32>
    %8 = arith.truncf %7 : vector<128x4xf32> to vector<128x4xbf16>
    %c0_8 = arith.constant 0 : index
    %c0_9 = arith.constant 0 : index
    %9 = vector.load %arg5[%c0_8, %c0_9] : memref<4x128xbf16, #tpu.memory_space<vmem>>, vector<4x128xbf16>
    %cst_10 = arith.constant dense<0.000000e+00> : vector<128x128xf32>
    %10 = tpu.matmul %8, %9, %cst_10 {dimension_numbers = #tpu.dot_dimension_numbers<[1], [0], [0], [1], [0, 0, 1, 1], [], []>} : vector<128x4xbf16>, vector<4x128xbf16>, vector<128x128xf32> -> vector<128x128xf32>
    %11 = arith.addf %5, %10 : vector<128x128xf32>
    %c0_11 = arith.constant 0 : index
    %c0_12 = arith.constant 0 : index
    %12 = vector.load %arg6[%c0_11, %c0_12] : memref<128x128xf32, #tpu.memory_space<vmem>>, vector<128x128xf32>
    tpu.vector_store %arg6[%c0_11, %c0_12], %11 {strides = array<i32>} : memref<128x128xf32, #tpu.memory_space<vmem>>, vector<128x128xf32>,
    return
  }
  func.func @transform_0(%arg0: i32) -> (i32, i32) {
    %c0_i32 = arith.constant 0 : i32
    %c0_i32_0 = arith.constant 0 : i32
    return %arg0, %c0_i32 : i32, i32
  }
  func.func @transform_1(%arg0: i32) -> (i32, i32) {
    %c0_i32 = arith.constant 0 : i32
    %c0_i32_0 = arith.constant 0 : i32
    %c0_i32_1 = arith.constant 0 : i32
    return %c0_i32, %c0_i32_0 : i32, i32
  }
  func.func @transform_2(%arg0: i32) -> (i32, i32) {
    %c0_i32 = arith.constant 0 : i32
    %c0_i32_0 = arith.constant 0 : i32
    %c0_i32_1 = arith.constant 0 : i32
    return %c0_i32, %c0_i32_0 : i32, i32
  }
  func.func @transform_3(%arg0: i32) -> (i32, i32) {
    %c0_i32 = arith.constant 0 : i32
    %c0_i32_0 = arith.constant 0 : i32
    %c0_i32_1 = arith.constant 0 : i32
    return %c0_i32, %c0_i32_0 : i32, i32
  }
  func.func @transform_4(%arg0: i32) -> (i32, i32) {
    %c0_i32 = arith.constant 0 : i32
    %c0_i32_0 = arith.constant 0 : i32
    %c0_i32_1 = arith.constant 0 : i32
    return %c0_i32, %c0_i32_0 : i32, i32
  }
  func.func @transform_5(%arg0: i32) -> (i32, i32) {
    %c0_i32 = arith.constant 0 : i32
    %c0_i32_0 = arith.constant 0 : i32
    return %arg0, %c0_i32 : i32, i32
  }
}

</mosaic_0001>

<llo_original>
// kernel: tpu_custom_call.1
$region0: #{tpu_custom_call.1}
  #allocation0 [shape = 'u32[]', space=smem, size = 0x4, offset = 0x4, fixed_abs, tag = 'smem constant byte address 0x4 - core index']
  #allocation1 [shape = 'u32[144,128]{1,0:T(1,128)}', space=vmem, size = 0x12000, scoped, tag = 'internal scratch']
  %s0 = inlined_call_operand.vmem [shape: bf16[128,128], index: 0, kind: input, shape index: {}]
  %s1 = inlined_call_operand.hbm [shape: bf16[128,128], index: 1, kind: input, shape index: {}]
  %s2 = inlined_call_operand.vmem [shape: f32[1,128], index: 2, kind: input, shape index: {}]
  %s3 = inlined_call_operand.vmem [shape: bf16[128,4], index: 3, kind: input, shape index: {}]
  %s4 = inlined_call_operand.vmem [shape: bf16[4,128], index: 4, kind: input, shape index: {}]
  %s5 = inlined_call_operand.hbm [shape: f32[128,128], index: 5, kind: output, shape index: {}]
  %s6 = sld [smem:[#allocation0]]
  $region34: #{tpu_custom_call.1} parent=0
    _
  %s8 = ssub.s32 1, %s6
  %s9 = scalar_select 0, %s8, %s6
  $region1: #{tpu_custom_call.1} parent=0
    #allocation2 [shape = 'u8[32768]{0}', space=vmem, size = 0x8000, scoped, tag = 'input window, operand 1, single buffered']
    #allocation3 [shape = 's32[1]{0}', space=sflag, size = 0x4, scoped, tag = 'scoped memory for tpu_custom_call.1']
    #allocation4 [shape = 's32[1]{0}', space=sflag, size = 0x4, scoped, tag = 'scoped memory for tpu_custom_call.1']
    #allocation5 [shape = 'u8[65536]{0}', space=vmem, size = 0x10000, scoped, tag = 'output window, operand 0, single buffered']
    %10 = vsyncpa [#allocation3], 0
    %11 = vsyncpa [#allocation4], 0
    // Predicated region
    $region2: #{tpu_custom_call.1} parent=1 // pred_check
      _
    $region3: #{tpu_custom_call.1} parent=1 // pred_check_branch
      %13 = sbr.rel (0) target = $region5
    $region4: #{tpu_custom_call.1} parent=1 // pred_region
      _
    $region5: #{tpu_custom_call.1} parent=1 // pred_fallthru
      _
    // Predicated region
    $region6: #{tpu_custom_call.1} parent=1 // pred_check
      _
    $region7: #{tpu_custom_call.1} parent=1 // pred_check_branch
      %15 = sbr.rel (0) target = $region9
    $region8: #{tpu_custom_call.1} parent=1 // pred_region
      %s17 = ssub.s32 1024, 1024
      %18 = vsyncadd [#allocation3], %s17
      %s19 = sshll.u32 [#allocation2], 4
      %s20 = int_to_ptr.vmem [resolvable:$true] %s19
      %25 = dma.hbm_to_vmem [thread:$0]  %s1, 1024, %s20, [#allocation3], 64, 64, 4
    $region9: #{tpu_custom_call.1} parent=1 // pred_fallthru
      _
    // Predicated region
    $region10: #{tpu_custom_call.1} parent=1 // pred_check
      _
    $region11: #{tpu_custom_call.1} parent=1 // pred_check_branch
      %27 = sbr.rel (0) target = $region13
    $region12: #{tpu_custom_call.1} parent=1 // pred_region
      _
    $region13: #{tpu_custom_call.1} parent=1 // pred_fallthru
      _
    // Predicated region
    $region14: #{tpu_custom_call.1} parent=1 // pred_check
      _
    $region15: #{tpu_custom_call.1} parent=1 // pred_check_branch
      %29 = sbr.rel (0) target = $region17
    $region16: #{tpu_custom_call.1} parent=1 // pred_region
      _
    $region17: #{tpu_custom_call.1} parent=1 // pred_fallthru
      _
    // Predicated region
    $region18: #{tpu_custom_call.1} parent=1 // pred_check
      _
    $region19: #{tpu_custom_call.1} parent=1 // pred_check_branch
      %31 = sbr.rel (0) target = $region21
    $region20: #{tpu_custom_call.1} parent=1 // pred_region
      _
    $region21: #{tpu_custom_call.1} parent=1 // pred_fallthru
      _
    // Predicated region
    $region22: #{tpu_custom_call.1} parent=1 // pred_check
      _
    $region23: #{tpu_custom_call.1} parent=1 // pred_check_branch
      %33 = sbr.rel (0) target = $region25
    $region24: #{tpu_custom_call.1} parent=1 // pred_region
      %34 = dma.done [#allocation3], 1024
    $region25: #{tpu_custom_call.1} parent=1 // pred_fallthru
      _
    %v36 = vld [vmem:[%s0] sm:$0xf]
    %v37 = vld [vmem:[%s0 + $0x4] sm:$0xf]
    %v38 = vld [vmem:[%s0 + $0x8] sm:$0xf]
    %v39 = vld [vmem:[%s0 + $0xc] sm:$0xf]
    %v40 = vld [vmem:[%s0 + $0x10] sm:$0xf]
    %v41 = vld [vmem:[%s0 + $0x14] sm:$0xf]
    %v42 = vld [vmem:[%s0 + $0x18] sm:$0xf]
    %v43 = vld [vmem:[%s0 + $0x1c] sm:$0xf]
    %v44 = vld [vmem:[%s0 + $0x20] sm:$0xf]
    %v45 = vld [vmem:[%s0 + $0x24] sm:$0xf]
    %v46 = vld [vmem:[%s0 + $0x28] sm:$0xf]
    %v47 = vld [vmem:[%s0 + $0x2c] sm:$0xf]
    %v48 = vld [vmem:[%s0 + $0x30] sm:$0xf]
    %v49 = vld [vmem:[%s0 + $0x34] sm:$0xf]
    %v50 = vld [vmem:[%s0 + $0x38] sm:$0xf]
    %v51 = vld [vmem:[%s0 + $0x3c] sm:$0xf]
    %v52 = vld [vmem:[#allocation2] sm:$0xf]
    %v53 = vld [vmem:[#allocation2 + $0x4] sm:$0xf]
    %v54 = vld [vmem:[#allocation2 + $0x8] sm:$0xf]
    %v55 = vld [vmem:[#allocation2 + $0xc] sm:$0xf]
    %v56 = vld [vmem:[#allocation2 + $0x10] sm:$0xf]
    %v57 = vld [vmem:[#allocation2 + $0x14] sm:$0xf]
    %v58 = vld [vmem:[#allocation2 + $0x18] sm:$0xf]
    %v59 = vld [vmem:[#allocation2 + $0x1c] sm:$0xf]
    %v60 = vld [vmem:[#allocation2 + $0x20] sm:$0xf]
    %v61 = vld [vmem:[#allocation2 + $0x24] sm:$0xf]
    %v62 = vld [vmem:[#allocation2 + $0x28] sm:$0xf]
    %v63 = vld [vmem:[#allocation2 + $0x2c] sm:$0xf]
    %v64 = vld [vmem:[#allocation2 + $0x30] sm:$0xf]
    %v65 = vld [vmem:[#allocation2 + $0x34] sm:$0xf]
    %v66 = vld [vmem:[#allocation2 + $0x38] sm:$0xf]
    %v67 = vld [vmem:[#allocation2 + $0x3c] sm:$0xf]
    %v68 = vld [vmem:[%s2] sm:$0x1]
    %v70 = vlaneseq
    %v71 = vshrl.u32 %v70, 7
    %v72 = vsub.s32 0, %v71
    %v73 = vrot.slane %v68, %v72
    %v91 = vunpack.c.l.b16 %v36
    %v92 = vunpack.c.l.b16 %v37
    %v93 = vunpack.c.l.b16 %v38
    %v94 = vunpack.c.l.b16 %v39
    %v95 = vunpack.c.l.b16 %v40
    %v96 = vunpack.c.l.b16 %v41
    %v97 = vunpack.c.l.b16 %v42
    %v98 = vunpack.c.l.b16 %v43
    %v99 = vunpack.c.l.b16 %v44
    %v100 = vunpack.c.l.b16 %v45
    %v101 = vunpack.c.l.b16 %v46
    %v102 = vunpack.c.l.b16 %v47
    %v103 = vunpack.c.l.b16 %v48
    %v104 = vunpack.c.l.b16 %v49
    %v105 = vunpack.c.l.b16 %v50
    %v106 = vunpack.c.l.b16 %v51
    %v107 = vpack.c.b16 %v92, %v91
    %v108 = vpack.c.b16 %v94, %v93
    %v109 = vpack.c.b16 %v96, %v95
    %v110 = vpack.c.b16 %v98, %v97
    %v111 = vpack.c.b16 %v100, %v99
    %v112 = vpack.c.b16 %v102, %v101
    %v113 = vpack.c.b16 %v104, %v103
    %v114 = vpack.c.b16 %v106, %v105
    %v139 = vunpack.c.l.b16 %v52
    %v140 = vunpack.c.l.b16 %v53
    %v141 = vunpack.c.l.b16 %v54
    %v142 = vunpack.c.l.b16 %v55
    %v143 = vunpack.c.l.b16 %v56
    %v144 = vunpack.c.l.b16 %v57
    %v145 = vunpack.c.l.b16 %v58
    %v146 = vunpack.c.l.b16 %v59
    %v147 = vunpack.c.l.b16 %v60
    %v148 = vunpack.c.l.b16 %v61
    %v149 = vunpack.c.l.b16 %v62
    %v150 = vunpack.c.l.b16 %v63
    %v151 = vunpack.c.l.b16 %v64
    %v152 = vunpack.c.l.b16 %v65
    %v153 = vunpack.c.l.b16 %v66
    %v154 = vunpack.c.l.b16 %v67
    %v155 = vpack.c.b16 %v140, %v139
    %v156 = vpack.c.b16 %v142, %v141
    %v157 = vpack.c.b16 %v144, %v143
    %v158 = vpack.c.b16 %v146, %v145
    %v159 = vpack.c.b16 %v148, %v147
    %v160 = vpack.c.b16 %v150, %v149
    %v161 = vpack.c.b16 %v152, %v151
    %v162 = vpack.c.b16 %v154, %v153
    %171 = vmatprep.subr.bf16.mxu0 0
    %172 = vmatpush1.bf16.msra.mxu0 %v155
    %173 = vmatprep.subr.bf16.mxu0 0
    %174 = vmatpush1.bf16.msra.mxu0 %v156
    %175 = vmatprep.subr.bf16.mxu0 0
    %176 = vmatpush1.bf16.msra.mxu0 %v157
    %177 = vmatprep.subr.bf16.mxu0 0
    %178 = vmatpush1.bf16.msra.mxu0 %v158
    %179 = vmatprep.subr.bf16.mxu0 0
    %180 = vmatpush1.bf16.msra.mxu0 %v159
    %181 = vmatprep.subr.bf16.mxu0 0
    %182 = vmatpush1.bf16.msra.mxu0 %v160
    %183 = vmatprep.subr.bf16.mxu0 0
    %184 = vmatpush1.bf16.msra.mxu0 %v161
    %185 = vmatprep.subr.bf16.mxu0 0
    %186 = vmatpush1.bf16.msra.mxu0 %v162
    %187 = vmatprep.subr.bf16.mxu0 0
    %188 = vmatpush1.bf16.msra.mxu0 0
    %189 = vmatprep.subr.bf16.mxu0 0
    %190 = vmatpush1.bf16.msra.mxu0 0
    %191 = vmatprep.subr.bf16.mxu0 0
    %192 = vmatpush1.bf16.msra.mxu0 0
    %193 = vmatprep.subr.bf16.mxu0 0
    %194 = vmatpush1.bf16.msra.mxu0 0
    %195 = vmatprep.subr.bf16.mxu0 0
    %196 = vmatpush1.bf16.msra.mxu0 0
    %197 = vmatprep.subr.bf16.mxu0 0
    %198 = vmatpush1.bf16.msra.mxu0 0
    %199 = vmatprep.subr.bf16.mxu0 0
    %200 = vmatpush1.bf16.msra.mxu0 0
    %201 = vmatprep.subr.bf16.mxu0 0
    %202 = vmatpush1.bf16.msra.mxu0 0
    %203 = vmatprep.mubr.bf16.mxu0 0
    %204 = vmatmul.mubr.bf16.gmra.mrb[0].mxu0 %v107
    %v205 = vpop.f32.mrb[0].mxu0
    %v206 = vadd.f32 %v73, %v205
    %v207 = vpop.f32.mrb[0].mxu0
    %v208 = vpop.f32.mrb[0].mxu0
    %v209 = vadd.f32 %v73, %v208
    %v210 = vpop.f32.mrb[0].mxu0
    %211 = vmatprep.mubr.bf16.mxu0 0
    %212 = vmatmul.mubr.bf16.gmra.mrb[0].mxu0 %v108
    %v213 = vpop.f32.mrb[0].mxu0
    %v214 = vadd.f32 %v73, %v213
    %v215 = vpop.f32.mrb[0].mxu0
    %v216 = vpop.f32.mrb[0].mxu0
    %v217 = vadd.f32 %v73, %v216
    %v218 = vpop.f32.mrb[0].mxu0
    %219 = vmatprep.mubr.bf16.mxu0 0
    %220 = vmatmul.mubr.bf16.gmra.mrb[0].mxu0 %v109
    %v221 = vpop.f32.mrb[0].mxu0
    %v222 = vadd.f32 %v73, %v221
    %v223 = vpop.f32.mrb[0].mxu0
    %v224 = vpop.f32.mrb[0].mxu0
    %v225 = vadd.f32 %v73, %v224
    %v226 = vpop.f32.mrb[0].mxu0
    %227 = vmatprep.mubr.bf16.mxu0 0
    %228 = vmatmul.mubr.bf16.gmra.mrb[0].mxu0 %v110
    %v229 = vpop.f32.mrb[0].mxu0
    %v230 = vadd.f32 %v73, %v229
    %v231 = vpop.f32.mrb[0].mxu0
    %v232 = vpop.f32.mrb[0].mxu0
    %v233 = vadd.f32 %v73, %v232
    %v234 = vpop.f32.mrb[0].mxu0
    %235 = vmatprep.mubr.bf16.mxu0 0
    %236 = vmatmul.mubr.bf16.gmra.mrb[0].mxu0 %v111
    %v237 = vpop.f32.mrb[0].mxu0
    %v238 = vadd.f32 %v73, %v237
    %v239 = vpop.f32.mrb[0].mxu0
    %v240 = vpop.f32.mrb[0].mxu0
    %v241 = vadd.f32 %v73, %v240
    %v242 = vpop.f32.mrb[0].mxu0
    %243 = vmatprep.mubr.bf16.mxu0 0
    %244 = vmatmul.mubr.bf16.gmra.mrb[0].mxu0 %v112
    %v245 = vpop.f32.mrb[0].mxu0
    %v246 = vadd.f32 %v73, %v245
    %v247 = vpop.f32.mrb[0].mxu0
    %v248 = vpop.f32.mrb[0].mxu0
    %v249 = vadd.f32 %v73, %v248
    %v250 = vpop.f32.mrb[0].mxu0
    %251 = vmatprep.mubr.bf16.mxu0 0
    %252 = vmatmul.mubr.bf16.gmra.mrb[0].mxu0 %v113
    %v253 = vpop.f32.mrb[0].mxu0
    %v254 = vadd.f32 %v73, %v253
    %v255 = vpop.f32.mrb[0].mxu0
    %v256 = vpop.f32.mrb[0].mxu0
    %v257 = vadd.f32 %v73, %v256
    %v258 = vpop.f32.mrb[0].mxu0
    %259 = vmatprep.mubr.bf16.mxu0 0
    %260 = vmatmul.mubr.bf16.gmra.mrb[0].mxu0 %v114
    %v261 = vpop.f32.mrb[0].mxu0
    %v262 = vadd.f32 %v73, %v261
    %v263 = vpop.f32.mrb[0].mxu0
    %v264 = vpop.f32.mrb[0].mxu0
    %v265 = vadd.f32 %v73, %v264
    %v266 = vpop.f32.mrb[0].mxu0
    %267 = vdwg.mxu0
    %v268 = vld [vmem:[%s3] sm:$0xf]
    %v269 = vld [vmem:[%s3 + $0x4] sm:$0xf]
    %v270 = vld [vmem:[%s3 + $0x8] sm:$0xf]
    %v271 = vld [vmem:[%s3 + $0xc] sm:$0xf]
    %v272 = vld [vmem:[%s3 + $0x10] sm:$0xf]
    %v273 = vld [vmem:[%s3 + $0x14] sm:$0xf]
    %v274 = vld [vmem:[%s3 + $0x18] sm:$0xf]
    %v275 = vld [vmem:[%s3 + $0x1c] sm:$0xf]
    %v276 = vld [vmem:[%s3 + $0x20] sm:$0xf]
    %v277 = vld [vmem:[%s3 + $0x24] sm:$0xf]
    %v278 = vld [vmem:[%s3 + $0x28] sm:$0xf]
    %v279 = vld [vmem:[%s3 + $0x2c] sm:$0xf]
    %v280 = vld [vmem:[%s3 + $0x30] sm:$0xf]
    %v281 = vld [vmem:[%s3 + $0x34] sm:$0xf]
    %v282 = vld [vmem:[%s3 + $0x38] sm:$0xf]
    %v283 = vld [vmem:[%s3 + $0x3c] sm:$0xf]
    %v300 = vunpack.c.l.b16 %v268
    %v301 = vunpack.c.l.b16 %v269
    %v302 = vunpack.c.l.b16 %v270
    %v303 = vunpack.c.l.b16 %v271
    %v304 = vunpack.c.l.b16 %v272
    %v305 = vunpack.c.l.b16 %v273
    %v306 = vunpack.c.l.b16 %v274
    %v307 = vunpack.c.l.b16 %v275
    %v308 = vunpack.c.l.b16 %v276
    %v309 = vunpack.c.l.b16 %v277
    %v310 = vunpack.c.l.b16 %v278
    %v311 = vunpack.c.l.b16 %v279
    %v312 = vunpack.c.l.b16 %v280
    %v313 = vunpack.c.l.b16 %v281
    %v314 = vunpack.c.l.b16 %v282
    %v315 = vunpack.c.l.b16 %v283
    %v316 = vpack.c.b16 %v301, %v300
    %v317 = vpack.c.b16 %v303, %v302
    %v318 = vpack.c.b16 %v305, %v304
    %v319 = vpack.c.b16 %v307, %v306
    %v320 = vpack.c.b16 %v309, %v308
    %v321 = vpack.c.b16 %v311, %v310
    %v322 = vpack.c.b16 %v313, %v312
    %v323 = vpack.c.b16 %v315, %v314
    %332 = vmatprep.subr.bf16.mxu0 0
    %333 = vmatpush1.bf16.msra.mxu0 %v316
    %334 = vmatprep.subr.bf16.mxu0 0
    %335 = vmatpush1.bf16.msra.mxu0 %v317
    %336 = vmatprep.subr.bf16.mxu0 0
    %337 = vmatpush1.bf16.msra.mxu0 %v318
    %338 = vmatprep.subr.bf16.mxu0 0
    %339 = vmatpush1.bf16.msra.mxu0 %v319
    %340 = vmatprep.subr.bf16.mxu0 0
    %341 = vmatpush1.bf16.msra.mxu0 %v320
    %342 = vmatprep.subr.bf16.mxu0 0
    %343 = vmatpush1.bf16.msra.mxu0 %v321
    %344 = vmatprep.subr.bf16.mxu0 0
    %345 = vmatpush1.bf16.msra.mxu0 %v322
    %346 = vmatprep.subr.bf16.mxu0 0
    %347 = vmatpush1.bf16.msra.mxu0 %v323
    %348 = vmatprep.subr.bf16.mxu0 0
    %349 = vmatpush1.bf16.msra.mxu0 0
    %350 = vmatprep.subr.bf16.mxu0 0
    %351 = vmatpush1.bf16.msra.mxu0 0
    %352 = vmatprep.subr.bf16.mxu0 0
    %353 = vmatpush1.bf16.msra.mxu0 0
    %354 = vmatprep.subr.bf16.mxu0 0
    %355 = vmatpush1.bf16.msra.mxu0 0
    %356 = vmatprep.subr.bf16.mxu0 0
    %357 = vmatpush1.bf16.msra.mxu0 0
    %358 = vmatprep.subr.bf16.mxu0 0
    %359 = vmatpush1.bf16.msra.mxu0 0
    %360 = vmatprep.subr.bf16.mxu0 0
    %361 = vmatpush1.bf16.msra.mxu0 0
    %362 = vmatprep.subr.bf16.mxu0 0
    %363 = vmatpush1.bf16.msra.mxu0 0
    %364 = vmatprep.mubr.bf16.mxu0 0
    %365 = vmatmul.mubr.bf16.gmra.mrb[0].mxu0 %v107
    %v366 = vpop.f32.mrb[0].mxu0
    %v367 = vadd.f32 0.0, %v366
    %v368 = vpop.f32.mrb[0].mxu0
    %v369 = vpop.f32.mrb[0].mxu0
    %v370 = vadd.f32 0.0, %v369
    %v371 = vpop.f32.mrb[0].mxu0
    %372 = vmatprep.mubr.bf16.mxu0 0
    %373 = vmatmul.mubr.bf16.gmra.mrb[0].mxu0 %v108
    %v374 = vpop.f32.mrb[0].mxu0
    %v375 = vadd.f32 0.0, %v374
    %v376 = vpop.f32.mrb[0].mxu0
    %v377 = vpop.f32.mrb[0].mxu0
    %v378 = vadd.f32 0.0, %v377
    %v379 = vpop.f32.mrb[0].mxu0
    %380 = vmatprep.mubr.bf16.mxu0 0
    %381 = vmatmul.mubr.bf16.gmra.mrb[0].mxu0 %v109
    %v382 = vpop.f32.mrb[0].mxu0
    %v383 = vadd.f32 0.0, %v382
    %v384 = vpop.f32.mrb[0].mxu0
    %v385 = vpop.f32.mrb[0].mxu0
    %v386 = vadd.f32 0.0, %v385
    %v387 = vpop.f32.mrb[0].mxu0
    %388 = vmatprep.mubr.bf16.mxu0 0
    %389 = vmatmul.mubr.bf16.gmra.mrb[0].mxu0 %v110
    %v390 = vpop.f32.mrb[0].mxu0
    %v391 = vadd.f32 0.0, %v390
    %v392 = vpop.f32.mrb[0].mxu0
    %v393 = vpop.f32.mrb[0].mxu0
    %v394 = vadd.f32 0.0, %v393
    %v395 = vpop.f32.mrb[0].mxu0
    %396 = vmatprep.mubr.bf16.mxu0 0
    %397 = vmatmul.mubr.bf16.gmra.mrb[0].mxu0 %v111
    %v398 = vpop.f32.mrb[0].mxu0
    %v399 = vadd.f32 0.0, %v398
    %v400 = vpop.f32.mrb[0].mxu0
    %v401 = vpop.f32.mrb[0].mxu0
    %v402 = vadd.f32 0.0, %v401
    %v403 = vpop.f32.mrb[0].mxu0
    %404 = vmatprep.mubr.bf16.mxu0 0
    %405 = vmatmul.mubr.bf16.gmra.mrb[0].mxu0 %v112
    %v406 = vpop.f32.mrb[0].mxu0
    %v407 = vadd.f32 0.0, %v406
    %v408 = vpop.f32.mrb[0].mxu0
    %v409 = vpop.f32.mrb[0].mxu0
    %v410 = vadd.f32 0.0, %v409
    %v411 = vpop.f32.mrb[0].mxu0
    %412 = vmatprep.mubr.bf16.mxu0 0
    %413 = vmatmul.mubr.bf16.gmra.mrb[0].mxu0 %v113
    %v414 = vpop.f32.mrb[0].mxu0
    %v415 = vadd.f32 0.0, %v414
    %v416 = vpop.f32.mrb[0].mxu0
    %v417 = vpop.f32.mrb[0].mxu0
    %v418 = vadd.f32 0.0, %v417
    %v419 = vpop.f32.mrb[0].mxu0
    %420 = vmatprep.mubr.bf16.mxu0 0
    %421 = vmatmul.mubr.bf16.gmra.mrb[0].mxu0 %v114
    %v422 = vpop.f32.mrb[0].mxu0
    %v423 = vadd.f32 0.0, %v422
    %v424 = vpop.f32.mrb[0].mxu0
    %v425 = vpop.f32.mrb[0].mxu0
    %v426 = vadd.f32 0.0, %v425
    %v427 = vpop.f32.mrb[0].mxu0
    %428 = vdwg.mxu0
    %v429 = vpack.c.bf16 %v370, %v367
    %v430 = vpack.c.bf16 %v378, %v375
    %v431 = vpack.c.bf16 %v386, %v383
    %v432 = vpack.c.bf16 %v394, %v391
    %v433 = vpack.c.bf16 %v402, %v399
    %v434 = vpack.c.bf16 %v410, %v407
    %v435 = vpack.c.bf16 %v418, %v415
    %v436 = vpack.c.bf16 %v426, %v423
    %v437 = vld [vmem:[%s4] sm:$0x3]
    %vm438 = vcmask 31744
    %v440 = vsel %vm438, %v429, 0
    %v443 = vsel %vm438, %v430, 0
    %v446 = vsel %vm438, %v431, 0
    %v449 = vsel %vm438, %v432, 0
    %v452 = vsel %vm438, %v433, 0
    %v455 = vsel %vm438, %v434, 0
    %v458 = vsel %vm438, %v435, 0
    %v461 = vsel %vm438, %v436, 0
    %vm463 = vcmask 1041408
    %v465 = vsel %vm463, %v437, 0
    %467 = vmatprep.subr.bf16.mxu0 0
    %468 = vmatpush1.bf16.msra.mxu0 %v465
    %469 = vmatprep.subr.bf16.mxu0 0
    %470 = vmatpush1.bf16.msra.mxu0 0
    %471 = vmatprep.subr.bf16.mxu0 0
    %472 = vmatpush1.bf16.msra.mxu0 0
    %473 = vmatprep.subr.bf16.mxu0 0
    %474 = vmatpush1.bf16.msra.mxu0 0
    %475 = vmatprep.subr.bf16.mxu0 0
    %476 = vmatpush1.bf16.msra.mxu0 0
    %477 = vmatprep.subr.bf16.mxu0 0
    %478 = vmatpush1.bf16.msra.mxu0 0
    %479 = vmatprep.subr.bf16.mxu0 0
    %480 = vmatpush1.bf16.msra.mxu0 0
    %481 = vmatprep.subr.bf16.mxu0 0
    %482 = vmatpush1.bf16.msra.mxu0 0
    %483 = vmatprep.subr.bf16.mxu0 0
    %484 = vmatpush1.bf16.msra.mxu0 0
    %485 = vmatprep.subr.bf16.mxu0 0
    %486 = vmatpush1.bf16.msra.mxu0 0
    %487 = vmatprep.subr.bf16.mxu0 0
    %488 = vmatpush1.bf16.msra.mxu0 0
    %489 = vmatprep.subr.bf16.mxu0 0
    %490 = vmatpush1.bf16.msra.mxu0 0
    %491 = vmatprep.subr.bf16.mxu0 0
    %492 = vmatpush1.bf16.msra.mxu0 0
    %493 = vmatprep.subr.bf16.mxu0 0
    %494 = vmatpush1.bf16.msra.mxu0 0
    %495 = vmatprep.subr.bf16.mxu0 0
    %496 = vmatpush1.bf16.msra.mxu0 0
    %497 = vmatprep.subr.bf16.mxu0 0
    %498 = vmatpush1.bf16.msra.mxu0 0
    %499 = vmatprep.mubr.bf16.mxu0 0
    %500 = vmatmul.mubr.bf16.gmra.mrb[0].mxu0 %v440
    %v501 = vpop.f32.mrb[0].mxu0
    %v502 = vadd.f32 0.0, %v501
    %v503 = vpop.f32.mrb[0].mxu0
    %v504 = vpop.f32.mrb[0].mxu0
    %v505 = vadd.f32 0.0, %v504
    %v506 = vpop.f32.mrb[0].mxu0
    %507 = vmatprep.mubr.bf16.mxu0 0
    %508 = vmatmul.mubr.bf16.gmra.mrb[0].mxu0 %v443
    %v509 = vpop.f32.mrb[0].mxu0
    %v510 = vadd.f32 0.0, %v509
    %v511 = vpop.f32.mrb[0].mxu0
    %v512 = vpop.f32.mrb[0].mxu0
    %v513 = vadd.f32 0.0, %v512
    %v514 = vpop.f32.mrb[0].mxu0
    %515 = vmatprep.mubr.bf16.mxu0 0
    %516 = vmatmul.mubr.bf16.gmra.mrb[0].mxu0 %v446
    %v517 = vpop.f32.mrb[0].mxu0
    %v518 = vadd.f32 0.0, %v517
    %v519 = vpop.f32.mrb[0].mxu0
    %v520 = vpop.f32.mrb[0].mxu0
    %v521 = vadd.f32 0.0, %v520
    %v522 = vpop.f32.mrb[0].mxu0
    %523 = vmatprep.mubr.bf16.mxu0 0
    %524 = vmatmul.mubr.bf16.gmra.mrb[0].mxu0 %v449
    %v525 = vpop.f32.mrb[0].mxu0
    %v526 = vadd.f32 0.0, %v525
    %v527 = vpop.f32.mrb[0].mxu0
    %v528 = vpop.f32.mrb[0].mxu0
    %v529 = vadd.f32 0.0, %v528
    %v530 = vpop.f32.mrb[0].mxu0
    %531 = vmatprep.mubr.bf16.mxu0 0
    %532 = vmatmul.mubr.bf16.gmra.mrb[0].mxu0 %v452
    %v533 = vpop.f32.mrb[0].mxu0
    %v534 = vadd.f32 0.0, %v533
    %v535 = vpop.f32.mrb[0].mxu0
    %v536 = vpop.f32.mrb[0].mxu0
    %v537 = vadd.f32 0.0, %v536
    %v538 = vpop.f32.mrb[0].mxu0
    %539 = vmatprep.mubr.bf16.mxu0 0
    %540 = vmatmul.mubr.bf16.gmra.mrb[0].mxu0 %v455
    %v541 = vpop.f32.mrb[0].mxu0
    %v542 = vadd.f32 0.0, %v541
    %v543 = vpop.f32.mrb[0].mxu0
    %v544 = vpop.f32.mrb[0].mxu0
    %v545 = vadd.f32 0.0, %v544
    %v546 = vpop.f32.mrb[0].mxu0
    %547 = vmatprep.mubr.bf16.mxu0 0
    %548 = vmatmul.mubr.bf16.gmra.mrb[0].mxu0 %v458
    %v549 = vpop.f32.mrb[0].mxu0
    %v550 = vadd.f32 0.0, %v549
    %v551 = vpop.f32.mrb[0].mxu0
    %v552 = vpop.f32.mrb[0].mxu0
    %v553 = vadd.f32 0.0, %v552
    %v554 = vpop.f32.mrb[0].mxu0
    %555 = vmatprep.mubr.bf16.mxu0 0
    %556 = vmatmul.mubr.bf16.gmra.mrb[0].mxu0 %v461
    %v557 = vpop.f32.mrb[0].mxu0
    %v558 = vadd.f32 0.0, %v557
    %v559 = vpop.f32.mrb[0].mxu0
    %v560 = vpop.f32.mrb[0].mxu0
    %v561 = vadd.f32 0.0, %v560
    %v562 = vpop.f32.mrb[0].mxu0
    %563 = vdwg.mxu0
    %v564 = vadd.f32 %v206, %v502
    %v565 = vadd.f32 %v209, %v505
    %v566 = vadd.f32 %v214, %v510
    %v567 = vadd.f32 %v217, %v513
    %v568 = vadd.f32 %v222, %v518
    %v569 = vadd.f32 %v225, %v521
    %v570 = vadd.f32 %v230, %v526
    %v571 = vadd.f32 %v233, %v529
    %v572 = vadd.f32 %v238, %v534
    %v573 = vadd.f32 %v241, %v537
    %v574 = vadd.f32 %v246, %v542
    %v575 = vadd.f32 %v249, %v545
    %v576 = vadd.f32 %v254, %v550
    %v577 = vadd.f32 %v257, %v553
    %v578 = vadd.f32 %v262, %v558
    %v579 = vadd.f32 %v265, %v561
    %580 = vst [vmem:[#allocation5] sm:$0xff] %v564
    %581 = vst [vmem:[#allocation5 + $0x8] sm:$0xff] %v565
    %582 = vst [vmem:[#allocation5 + $0x10] sm:$0xff] %v566
    %583 = vst [vmem:[#allocation5 + $0x18] sm:$0xff] %v567
    %584 = vst [vmem:[#allocation5 + $0x20] sm:$0xff] %v568
    %585 = vst [vmem:[#allocation5 + $0x28] sm:$0xff] %v569
    %586 = vst [vmem:[#allocation5 + $0x30] sm:$0xff] %v570
    %587 = vst [vmem:[#allocation5 + $0x38] sm:$0xff] %v571
    %588 = vst [vmem:[#allocation5 + $0x40] sm:$0xff] %v572
    %589 = vst [vmem:[#allocation5 + $0x48] sm:$0xff] %v573
    %590 = vst [vmem:[#allocation5 + $0x50] sm:$0xff] %v574
    %591 = vst [vmem:[#allocation5 + $0x58] sm:$0xff] %v575
    %592 = vst [vmem:[#allocation5 + $0x60] sm:$0xff] %v576
    %593 = vst [vmem:[#allocation5 + $0x68] sm:$0xff] %v577
    %594 = vst [vmem:[#allocation5 + $0x70] sm:$0xff] %v578
    %595 = vst [vmem:[#allocation5 + $0x78] sm:$0xff] %v579
    // Predicated region
    $region26: #{tpu_custom_call.1} parent=1 // pred_check
      _
    $region27: #{tpu_custom_call.1} parent=1 // pred_check_branch
      %597 = sbr.rel (0) target = $region29
    $region28: #{tpu_custom_call.1} parent=1 // pred_region
      %s599 = ssub.s32 2048, 2048
      %600 = vsyncadd [#allocation4], %s599
      %s601 = sshll.u32 [#allocation5], 4
      %s602 = int_to_ptr.vmem [resolvable:$true] %s601
      %607 = dma.vmem_to_hbm [thread:$0]  %s602, 2048, %s5, [#allocation4], 128, 128, 8
    $region29: #{tpu_custom_call.1} parent=1 // pred_fallthru
      _
    // Predicated region
    $region30: #{tpu_custom_call.1} parent=1 // pred_check
      _
    $region31: #{tpu_custom_call.1} parent=1 // pred_check_branch
      %609 = sbr.rel (0) target = $region33
    $region32: #{tpu_custom_call.1} parent=1 // pred_region
      %610 = dma.done [#allocation4], 2048
    $region33: #{tpu_custom_call.1} parent=1 // pred_fallthru
      _
    %611 = vsyncpa [#allocation3], 1
    %612 = vsyncpa [#allocation4], 1

</llo_original>
